<compile_context>
chip_gen: v6e
topology: v6e:2x2x1
jax: 0.10.0
libtpu: 0.0.40
codegen_flags: <defaults>
</compile_context>

<pallas_src>
import jax
import jax.numpy as jnp
from jax.experimental import pallas as pl
from jax.experimental.pallas import tpu as pltpu

# Hyperparameters from the reference script.
H = {'N': 4, 'K': 12, 'L': 8, 'lambda_latent': 0.001}
ALPHA = 0.02                       # Loss.alpha
K_CLASSES = H['K']                 # module-level K used in the alpha smoothing
LAMBDA_LATENT = H['lambda_latent']

# Trace-time constants: (p + a) / (a*K + 1)  ==  p*INV + A_INV  (one FMA).
INV = 1.0 / (ALPHA * K_CLASSES + 1.0)
A_INV = ALPHA * INV


def _make_loss_kernel(kl: bool, mse: bool):
    """Builds the Pallas kernel for a static (kl, mse) flag combination."""

    def kernel(epoch_ref, pred_ref, tgt_ref, lat_ref, out_ref):
        # Scalar read first (scalar unit, off the vector critical path).
        epoch = epoch_ref[0]

        pred = pred_ref[...].astype(jnp.float32)     # (B*N, K)
        tgt = tgt_ref[...].astype(jnp.float32)       # (B*N, K)

        total = jnp.float32(0.0)

        if kl:
            # Alpha smoothing folded into a single multiply-add.
            pred = pred * jnp.float32(INV) + jnp.float32(A_INV)
            pred_log = jnp.log(pred + jnp.float32(1e-10))
            # PyTorch kl_div: target * (log(target) - input), zero where
            # target == 0.  Clamp the log argument so the discarded branch
            # never generates -inf/NaN.
            safe_tgt = jnp.where(tgt > 0, tgt, jnp.float32(1.0))
            elem = jnp.where(tgt > 0, tgt * (jnp.log(safe_tgt) - pred_log),
                             jnp.float32(0.0))
            total = total + jnp.sum(elem)

        if mse:
            # Matches the torch code: when kl=True, `pred` here is the
            # alpha-smoothed tensor (in-place mutation in torch); when
            # kl=False it is the raw prediction.  Intentional - do not "fix".
            total = total + jnp.mean((pred - tgt) ** 2)

        # Packed latent buffer: rows [0, 2B) are [mu_xy; mu_x],
        # rows [2B, 4B) are [logvar_xy; logvar_x].  Summing the Gaussian KL
        # over the packed halves equals kl_latent_xy + kl_latent_x.
        lat = lat_ref[...].astype(jnp.float32)       # (4B, L)
        half = lat.shape[0] // 2
        mu = lat[:half, :]
        logvar = lat[half:, :]
        latent = -0.5 * jnp.sum(1.0 + logvar - mu * mu - jnp.exp(logvar))

        # Gate the whole expression the same way the reference does.
        out_ref[0, 0] = jnp.where(
            epoch > 100, total + jnp.float32(LAMBDA_LATENT) * latent, total)

    return kernel


def loss_forward(predicted, target, mu_xy, logvar_xy, mu_x, logvar_x, epoch,
                 *, kl=True, mse=False):
    """Pallas equivalent of Loss.forward (the `cross` flag is dead code in torch)."""
    # torch .squeeze(dim=1): only drops dim 1 if it is of size 1.
    pred_sq = jnp.squeeze(predicted, axis=1) if predicted.shape[1] == 1 else predicted

    # Lane-friendly 2-D shapes (row-major reshape is free in the wrapper).
    B, N, Kc = pred_sq.shape
    pred2d = pred_sq.reshape(B * N, Kc)
    tgt2d = target.reshape(B * N, Kc)

    # Pack the four latent tensors into a single VMEM input.
    lat_packed = jnp.concatenate([mu_xy, mu_x, logvar_xy, logvar_x], axis=0)

    epoch_arr = jnp.asarray([epoch], dtype=jnp.int32)

    vmem = pl.BlockSpec(memory_space=pltpu.MemorySpace.VMEM)
    smem = pl.BlockSpec(memory_space=pltpu.MemorySpace.SMEM)

    out = pl.pallas_call(
        _make_loss_kernel(kl, mse),
        out_shape=jax.ShapeDtypeStruct((1, 1), jnp.float32),
        in_specs=[smem, vmem, vmem, vmem],
        out_specs=smem,
    )(epoch_arr, pred2d, tgt2d, lat_packed)
    return out[0, 0]


def loss_reference(predicted, target, mu_xy, logvar_xy, mu_x, logvar_x, epoch,
                   *, kl=True, mse=False):
    """Pure-JAX reference mirroring the PyTorch forward (for verification)."""
    pred = jnp.squeeze(predicted, axis=1)
    total = jnp.float32(0.0)
    if kl:
        pred = (pred + ALPHA) / (ALPHA * K_CLASSES + 1.0)
        pred_log = jnp.log(pred + 1e-10)
        safe_tgt = jnp.where(target > 0, target, 1.0)
        total = total + jnp.sum(
            jnp.where(target > 0, target * (jnp.log(safe_tgt) - pred_log), 0.0))
    if mse:
        total = total + jnp.mean((pred - target) ** 2)

    def gauss_kl(mu, logvar):
        return -0.5 * jnp.sum(1.0 + logvar - mu ** 2 - jnp.exp(logvar))

    latent = gauss_kl(mu_xy, logvar_xy) + gauss_kl(mu_x, logvar_x)
    return jnp.where(epoch > 100, total + LAMBDA_LATENT * latent, total)


if __name__ == "__main__":
    key = jax.random.PRNGKey(0)
    B, N, Kc, LAT = 2, H['N'], H['K'], 8   # batch, output_shape=(N, K), latent_dim=8
    k1, k2, k3, k4, k5, k6 = jax.random.split(key, 6)

    # model output_batch: (B, 1, N, K), rowwise softmax over K
    predicted = jax.nn.softmax(jax.random.normal(k1, (B, 1, N, Kc)),
                               axis=-1).astype(jnp.float32)
    # target probability rows: (B, N, K)
    target = jax.nn.softmax(jax.random.normal(k2, (B, N, Kc)),
                            axis=-1).astype(jnp.float32)
    mu_xy = jax.random.normal(k3, (B, LAT), dtype=jnp.float32)
    logvar_xy = 0.1 * jax.random.normal(k4, (B, LAT), dtype=jnp.float32)
    mu_x = jax.random.normal(k5, (B, LAT), dtype=jnp.float32)
    logvar_x = 0.1 * jax.random.normal(k6, (B, LAT), dtype=jnp.float32)
    epoch = 150  # > 100 so the latent KL term is included

    loss = loss_forward(predicted, target, mu_xy, logvar_xy, mu_x, logvar_x, epoch)
    loss = jax.block_until_ready(loss)

    ref = loss_reference(predicted, target, mu_xy, logvar_xy, mu_x, logvar_x, epoch)
    assert jnp.allclose(loss, ref, rtol=1e-5, atol=1e-5), (loss, ref)

    # Also check the epoch <= 100 branch and the mse path.
    loss2 = jax.block_until_ready(
        loss_forward(predicted, target, mu_xy, logvar_xy, mu_x, logvar_x, 50))
    ref2 = loss_reference(predicted, target, mu_xy, logvar_xy, mu_x, logvar_x, 50)
    assert jnp.allclose(loss2, ref2, rtol=1e-5, atol=1e-5), (loss2, ref2)

    loss3 = jax.block_until_ready(
        loss_forward(predicted, target, mu_xy, logvar_xy, mu_x, logvar_x, epoch,
                     kl=True, mse=True))
    ref3 = loss_reference(predicted, target, mu_xy, logvar_xy, mu_x, logvar_x,
                          epoch, kl=True, mse=True)
    assert jnp.allclose(loss3, ref3, rtol=1e-5, atol=1e-5), (loss3, ref3)

    # TODO(synk): the `cross` flag in the torch forward is dead code (never used);
    # it is intentionally not implemented.
    print("KERNEL_OK")
</pallas_src>

<mosaic_0001>
module attributes {stable_mosaic.version = 11 : i64} {
  func.func @kernel(%arg0: memref<1xi32, #tpu.memory_space<smem>>, %arg1: memref<8x12xf32, #tpu.memory_space<vmem>>, %arg2: memref<8x12xf32, #tpu.memory_space<vmem>>, %arg3: memref<8x8xf32, #tpu.memory_space<vmem>>, %arg4: memref<1x1xf32, #tpu.memory_space<smem>>) attributes {dimension_semantics = [], scalar_prefetch = 0 : i64, scratch_operands = 0 : i64, tpu.core_type = #tpu.core_type<tc>} {
    %c0 = arith.constant 0 : index
    %0 = memref.load %arg0[%c0] : memref<1xi32, #tpu.memory_space<smem>>
    %c0_0 = arith.constant 0 : index
    %c0_1 = arith.constant 0 : index
    %1 = vector.load %arg1[%c0_0, %c0_1] : memref<8x12xf32, #tpu.memory_space<vmem>>, vector<8x12xf32>
    %c0_2 = arith.constant 0 : index
    %c0_3 = arith.constant 0 : index
    %2 = vector.load %arg2[%c0_2, %c0_3] : memref<8x12xf32, #tpu.memory_space<vmem>>, vector<8x12xf32>
    %cst = arith.constant 0.806451618 : f32
    %3 = vector.broadcast %cst : f32 to vector<8x12xf32>
    %4 = arith.mulf %1, %3 : vector<8x12xf32>
    %cst_4 = arith.constant 0.0161290318 : f32
    %5 = vector.broadcast %cst_4 : f32 to vector<8x12xf32>
    %6 = arith.addf %4, %5 : vector<8x12xf32>
    %cst_5 = arith.constant 1.000000e-10 : f32
    %7 = vector.broadcast %cst_5 : f32 to vector<8x12xf32>
    %8 = arith.addf %6, %7 : vector<8x12xf32>
    %9 = math.log %8 : vector<8x12xf32>
    %cst_6 = arith.constant 0.000000e+00 : f32
    %10 = vector.broadcast %cst_6 : f32 to vector<8x12xf32>
    %11 = arith.cmpf ogt, %2, %10 : vector<8x12xf32>
    %cst_7 = arith.constant 1.000000e+00 : f32
    %12 = vector.broadcast %cst_7 : f32 to vector<8x12xf32>
    %13 = arith.select %11, %2, %12 : vector<8x12xi1>, vector<8x12xf32>
    %cst_8 = arith.constant 0.000000e+00 : f32
    %14 = vector.broadcast %cst_8 : f32 to vector<8x12xf32>
    %15 = arith.cmpf ogt, %2, %14 : vector<8x12xf32>
    %16 = math.log %13 : vector<8x12xf32>
    %17 = arith.subf %16, %9 : vector<8x12xf32>
    %18 = arith.mulf %2, %17 : vector<8x12xf32>
    %cst_9 = arith.constant 0.000000e+00 : f32
    %19 = vector.broadcast %cst_9 : f32 to vector<8x12xf32>
    %20 = arith.select %15, %18, %19 : vector<8x12xi1>, vector<8x12xf32>
    %21 = vector.shape_cast %20 : vector<8x12xf32> to vector<1x8x12xf32>
    %cst_10 = arith.constant dense<0.000000e+00> : vector<1xf32>
    %22 = vector.multi_reduction <add>, %21, %cst_10 [1, 2] : vector<1x8x12xf32> to vector<1xf32>
    %23 = vector.shape_cast %22 : vector<1xf32> to vector<1x1x1xf32>
    %24 = vector.extract %23[0, 0, 0] : f32 from vector<1x1x1xf32>
    %cst_11 = arith.constant 0.000000e+00 : f32
    %25 = arith.addf %cst_11, %24 : f32
    %c0_12 = arith.constant 0 : index
    %c0_13 = arith.constant 0 : index
    %26 = vector.load %arg3[%c0_12, %c0_13] : memref<8x8xf32, #tpu.memory_space<vmem>>, vector<8x8xf32>
    %27 = vector.extract_strided_slice %26 {offsets = [0, 0], sizes = [4, 8], strides = [1, 1]} : vector<8x8xf32> to vector<4x8xf32>
    %28 = vector.extract_strided_slice %26 {offsets = [4, 0], sizes = [4, 8], strides = [1, 1]} : vector<8x8xf32> to vector<4x8xf32>
    %cst_14 = arith.constant 1.000000e+00 : f32
    %29 = vector.broadcast %cst_14 : f32 to vector<4x8xf32>
    %30 = arith.addf %29, %28 : vector<4x8xf32>
    %31 = arith.mulf %27, %27 : vector<4x8xf32>
    %32 = arith.subf %30, %31 : vector<4x8xf32>
    %33 = math.exp %28 : vector<4x8xf32>
    %34 = arith.subf %32, %33 : vector<4x8xf32>
    %35 = vector.shape_cast %34 : vector<4x8xf32> to vector<1x4x8xf32>
    %cst_15 = arith.constant dense<0.000000e+00> : vector<1xf32>
    %36 = vector.multi_reduction <add>, %35, %cst_15 [1, 2] : vector<1x4x8xf32> to vector<1xf32>
    %37 = vector.shape_cast %36 : vector<1xf32> to vector<1x1x1xf32>
    %38 = vector.extract %37[0, 0, 0] : f32 from vector<1x1x1xf32>
    %cst_16 = arith.constant -5.000000e-01 : f32
    %39 = arith.mulf %cst_16, %38 : f32
    %c100_i32 = arith.constant 100 : i32
    %40 = arith.cmpi sgt, %0, %c100_i32 : i32
    %cst_17 = arith.constant 1.000000e-03 : f32
    %41 = arith.mulf %cst_17, %39 : f32
    %42 = arith.addf %25, %41 : f32
    %43 = arith.select %40, %42, %25 : f32
    %c0_18 = arith.constant 0 : index
    %c0_19 = arith.constant 0 : index
    %44 = memref.load %arg4[%c0_18, %c0_19] : memref<1x1xf32, #tpu.memory_space<smem>>
    memref.store %43, %arg4[%c0_18, %c0_19] : memref<1x1xf32, #tpu.memory_space<smem>>
    return
  }
}

</mosaic_0001>

<llo_original>
// kernel: tpu_custom_call.1
$region0: #{tpu_custom_call.1}
  #allocation0 [shape = 'u32[]', space=smem, size = 0x4, offset = 0x4, fixed_abs, tag = 'smem constant byte address 0x4 - core index']
  #allocation1 [shape = 'u32[144,128]{1,0:T(1,128)}', space=vmem, size = 0x12000, scoped, tag = 'internal scratch']
  #allocation2 [shape = 's32[1]{0:T(128)S(6)}', space=smem, size = 0x200, scoped, tag = 'scoped memory for tpu_custom_call.1']
  %s0 = inlined_call_operand.<no memory space> [shape: s32[1], index: 0, kind: input, shape index: {}]
  %s1 = inlined_call_operand.hbm [shape: f32[8,12], index: 1, kind: input, shape index: {}]
  %s2 = inlined_call_operand.hbm [shape: f32[8,12], index: 2, kind: input, shape index: {}]
  %s3 = inlined_call_operand.hbm [shape: f32[8,8], index: 3, kind: input, shape index: {}]
  %s4 = inlined_call_operand.hbm [shape: f32[1,1], index: 4, kind: output, shape index: {}]
  %s5 = sld [smem:[#allocation0]]
  $region38: #{tpu_custom_call.1} parent=0
    _
  %s7 = ssub.s32 1, %s5
  %s8 = scalar_select 0, %s7, %s5
  %9 = sst [smem:[#allocation2]] %s0
  $region1: #{tpu_custom_call.1} parent=0
    #allocation3 [shape = 'u8[4096]{0}', space=vmem, size = 0x1000, scoped, tag = 'input window, operand 1, single buffered']
    #allocation4 [shape = 's32[1]{0}', space=sflag, size = 0x4, scoped, tag = 'scoped memory for tpu_custom_call.1']
    #allocation5 [shape = 's32[1]{0}', space=sflag, size = 0x4, scoped, tag = 'scoped memory for tpu_custom_call.1']
    #allocation6 [shape = 'u8[4096]{0}', space=vmem, size = 0x1000, scoped, tag = 'input window, operand 2, single buffered']
    #allocation7 [shape = 's32[1]{0}', space=sflag, size = 0x4, scoped, tag = 'scoped memory for tpu_custom_call.1']
    #allocation8 [shape = 'u8[4096]{0}', space=vmem, size = 0x1000, scoped, tag = 'input window, operand 3, single buffered']
    #allocation9 [shape = 'u8[512]{0}', space=smem, size = 0x200, scoped, tag = 'output window, operand 0, single buffered']
    %10 = vsyncpa [#allocation4], 0
    %11 = vsyncpa [#allocation7], 0
    %12 = vsyncpa [#allocation5], 0
    // Predicated region
    $region2: #{tpu_custom_call.1} parent=1 // pred_check
      _
    $region3: #{tpu_custom_call.1} parent=1 // pred_check_branch
      %14 = sbr.rel (0) target = $region5
    $region4: #{tpu_custom_call.1} parent=1 // pred_region
      _
    $region5: #{tpu_custom_call.1} parent=1 // pred_fallthru
      _
    // Predicated region
    $region6: #{tpu_custom_call.1} parent=1 // pred_check
      _
    $region7: #{tpu_custom_call.1} parent=1 // pred_check_branch
      %16 = sbr.rel (0) target = $region9
    $region8: #{tpu_custom_call.1} parent=1 // pred_region
      %s18 = ssub.s32 128, 128
      %19 = vsyncadd [#allocation4], %s18
      %s21 = sshll.u32 [#allocation3], 4
      %s22 = int_to_ptr.vmem [resolvable:$true] %s21
      %24 = dma.hbm_to_vmem [thread:$0]  %s1, 128, %s22, [#allocation4]
    $region9: #{tpu_custom_call.1} parent=1 // pred_fallthru
      _
    // Predicated region
    $region10: #{tpu_custom_call.1} parent=1 // pred_check
      _
    $region11: #{tpu_custom_call.1} parent=1 // pred_check_branch
      %26 = sbr.rel (0) target = $region13
    $region12: #{tpu_custom_call.1} parent=1 // pred_region
      %s28 = ssub.s32 128, 128
      %29 = vsyncadd [#allocation7], %s28
      %s31 = sshll.u32 [#allocation6], 4
      %s32 = int_to_ptr.vmem [resolvable:$true] %s31
      %34 = dma.hbm_to_vmem [thread:$0]  %s2, 128, %s32, [#allocation7]
    $region13: #{tpu_custom_call.1} parent=1 // pred_fallthru
      _
    // Predicated region
    $region14: #{tpu_custom_call.1} parent=1 // pred_check
      _
    $region15: #{tpu_custom_call.1} parent=1 // pred_check_branch
      %36 = sbr.rel (0) target = $region17
    $region16: #{tpu_custom_call.1} parent=1 // pred_region
      %s38 = ssub.s32 128, 128
      %39 = vsyncadd [#allocation7], %s38
      %s41 = sshll.u32 [#allocation8], 4
      %s42 = int_to_ptr.vmem [resolvable:$true] %s41
      %44 = dma.hbm_to_vmem [thread:$0]  %s3, 128, %s42, [#allocation7]
    $region17: #{tpu_custom_call.1} parent=1 // pred_fallthru
      _
    // Predicated region
    $region18: #{tpu_custom_call.1} parent=1 // pred_check
      _
    $region19: #{tpu_custom_call.1} parent=1 // pred_check_branch
      %46 = sbr.rel (0) target = $region21
    $region20: #{tpu_custom_call.1} parent=1 // pred_region
      %47 = dma.done [#allocation4], 128
    $region21: #{tpu_custom_call.1} parent=1 // pred_fallthru
      _
    // Predicated region
    $region22: #{tpu_custom_call.1} parent=1 // pred_check
      _
    $region23: #{tpu_custom_call.1} parent=1 // pred_check_branch
      %49 = sbr.rel (0) target = $region25
    $region24: #{tpu_custom_call.1} parent=1 // pred_region
      %50 = dma.done [#allocation7], 128
    $region25: #{tpu_custom_call.1} parent=1 // pred_fallthru
      _
    // Predicated region
    $region26: #{tpu_custom_call.1} parent=1 // pred_check
      _
    $region27: #{tpu_custom_call.1} parent=1 // pred_check_branch
      %52 = sbr.rel (0) target = $region29
    $region28: #{tpu_custom_call.1} parent=1 // pred_region
      %53 = dma.done [#allocation7], 128
    $region29: #{tpu_custom_call.1} parent=1 // pred_fallthru
      _
    %s54 = sld [smem:[#allocation2]]
    %v55 = vld [vmem:[#allocation3] sm:$0xff]
    %v56 = vld [vmem:[#allocation6] sm:$0xff]
    %v57 = vmul.f32 %v55, 0.8064516
    %v58 = vadd.f32 %v57, 0.016129032
    %v59 = vadd.f32 %v58, 1e-10
    %v60 = vlog2.pop %v59
    %v61 = vmul.f32 %v60, 0.6931472
    %vm62 = vcmp.gt.f32.partialorder %v56, 0.0
    %v63 = vsel %vm62, %v56, 1.0
    %v64 = vlog2.pop %v63
    %v65 = vmul.f32 %v64, 0.6931472
    %v66 = vsub.f32 %v65, %v61
    %v67 = vmul.f32 %v56, %v66
    %v68 = vsel %vm62, %v67, 0.0
    %vm69 = vcmask 97280
    %v70 = vsel %vm69, %v68, 0.0
    %71 = vadd.xlane.f32.xlu0 %v70
    %v72 = vpop.xlane.xlu0 %71
    %v73 = vrot.slane %v72, 4
    %v74 = vadd.f32 %v72, %v73
    %v75 = vrot.slane %v74, 2
    %v76 = vadd.f32 %v74, %v75
    %v77 = vrot.slane %v76, 1
    %v78 = vadd.f32 %v76, %v77
    %s79 = vtos %v78
    %s80 = sadd.f32 %s79, 0.0
    %v81 = vld [vmem:[#allocation8] sm:$0xff]
    %v82 = vadd.f32 %v81, 1.0
    %v83 = vmul.f32 %v81, %v81
    %v85 = vrot.slane %v83, 4
    %v87 = vsub.f32 %v82, %v85
    %v88 = vmul.f32 %v81, 1.442695
    %v89 = vpow.pop %v88
    %v90 = vsub.f32 %v87, %v89
    %v92 = vrot.slane %v90, 4
    %vm94 = vcmask 60416
    %v95 = vsel %vm94, %v92, 0.0
    %96 = vadd.xlane.f32.xlu0 %v95
    %v97 = vpop.xlane.xlu0 %96
    %v98 = vrot.slane %v97, 4
    %v99 = vadd.f32 %v97, %v98
    %v100 = vrot.slane %v99, 2
    %v101 = vadd.f32 %v99, %v100
    %v102 = vrot.slane %v101, 1
    %v103 = vadd.f32 %v101, %v102
    %s104 = vtos %v103
    %s105 = smul.f32 %s104, -0.5
    %p106 = scmp.gt.s32.totalorder %s54, 100
    %s107 = smul.f32 %s105, 0.001
    %s108 = sadd.f32 %s80, %s107
    %s109 = scalar_select %p106, %s108, %s80
    %s110 = scalar_lea.smem [#allocation9], 0
    %111 = sst [smem:[%s110]] %s109
    // Predicated region
    $region30: #{tpu_custom_call.1} parent=1 // pred_check
      _
    $region31: #{tpu_custom_call.1} parent=1 // pred_check_branch
      %113 = sbr.rel (0) target = $region33
    $region32: #{tpu_custom_call.1} parent=1 // pred_region
      %s115 = ssub.s32 16, 16
      %116 = vsyncadd [#allocation5], %s115
      %119 = dma.smem_to_hbm [#allocation9], 16, %s4, [#allocation5]
    $region33: #{tpu_custom_call.1} parent=1 // pred_fallthru
      _
    // Predicated region
    $region34: #{tpu_custom_call.1} parent=1 // pred_check
      _
    $region35: #{tpu_custom_call.1} parent=1 // pred_check_branch
      %121 = sbr.rel (0) target = $region37
    $region36: #{tpu_custom_call.1} parent=1 // pred_region
      %122 = dma.done [#allocation5], 16
    $region37: #{tpu_custom_call.1} parent=1 // pred_fallthru
      _
    %123 = sfence
    %124 = vsyncpa [#allocation4], 1
    %125 = vsyncpa [#allocation7], 1
    %126 = vsyncpa [#allocation5], 1

</llo_original>
